<compile_context>
chip_gen: v7x
topology: tpu7x:2x2x1
jax: 0.10.0
libtpu: 0.0.40
codegen_flags: <defaults>
</compile_context>

<pallas_src>
import math

import jax
import jax.numpy as jnp
from jax.experimental import pallas as pl
from jax.experimental.pallas import tpu as pltpu


def _segment_embedding_kernel(row_ref, out_ref):
    # row_ref: VMEM (1, L) -- the selected embedding row, pre-folded to width L.
    # out_ref: VMEM (tm, L) -- current output tile; every row is the same.
    out_ref[...] = jnp.broadcast_to(row_ref[...], out_ref.shape)


def segment_embedding(input_ids: jax.Array, table: jax.Array) -> jax.Array:
    """input_ids: (B, S) int; table: (num_embeddings, 1, D).

    Returns (B, S, D) in table.dtype, every position equal to
    table[input_ids[0, 0], 0] (matches the PyTorch SegmentEmbedding.forward).
    """
    B, S = input_ids.shape
    E = table.shape[0]
    D = table.shape[-1]
    dtype = table.dtype
    itemsize = jnp.dtype(dtype).itemsize
    N = B * S  # number of (B, S) positions

    # --- lane-dense folding: L = lcm(D, 128) is always a multiple of 128, so
    # the output store is never masked.  Pad the position count if needed. ---
    if D % 128 == 0:
        fold = 1
    else:
        fold = 128 // math.gcd(D, 128)
    L = fold * D
    n_pad = ((N + fold - 1) // fold) * fold   # padded position count
    R = n_pad // fold                         # folded output rows

    # --- dtype-aware sublane multiple: 8 for f32, 16 for bf16, 32 for int8 ---
    sub = max(8, 32 // itemsize)

    # --- per-generation block sizing (output is pure HBM writeback) ---
    kind = ""
    try:
        kind = jax.devices()[0].device_kind.lower()
    except Exception:
        pass
    if "v7" in kind:
        max_block_bytes = 12 << 20
    elif "v6" in kind:
        max_block_bytes = 8 << 20
    else:
        max_block_bytes = 4 << 20           # v5e / unknown: keep 4 MiB

    total_out_bytes = R * L * itemsize
    # v7x has 2 TensorCores: make sure the "parallel" grid axis has >= 2 steps
    # for non-trivial outputs so both cores share the writeback bandwidth.
    min_steps = 2 if ("v7" in kind and total_out_bytes > (1 << 20)) else 1

    cap_rows = max(sub, (max_block_bytes // (L * itemsize)) // sub * sub)
    tm = min(cap_rows, pl.cdiv(R, min_steps))
    if tm < R:
        tm = max(sub, (tm // sub) * sub)    # sublane-aligned tile
    else:
        tm = R                              # full-extent block is always legal
    grid = (pl.cdiv(R, tm),)

    # Scoped-VMEM budget: 2 double-buffered output tiles + resident row + slack.
    vmem_limit = int(2 * tm * L * itemsize + 2 * L * itemsize + (2 << 20))

    # --- select + fold the single embedding row in the wrapper ---
    # TODO(synk): PyTorch raises IndexError for out-of-range input_ids[0,0];
    # dynamic_slice clamps to the last table row instead.
    seg = input_ids[0, 0].astype(jnp.int32)
    table_2d = table.reshape(E, D)
    row = jax.lax.dynamic_slice(table_2d, (seg, jnp.int32(0)), (1, D))
    if fold > 1:
        row = jnp.tile(row, (1, fold))      # (1, L)

    out_flat = pl.pallas_call(
        _segment_embedding_kernel,
        out_shape=jax.ShapeDtypeStruct((R, L), dtype),
        grid_spec=pltpu.PrefetchScalarGridSpec(
            num_scalar_prefetch=0,
            grid=grid,
            # (1, L) block == full array dims; constant index_map keeps the
            # row VMEM-resident across all grid steps.
            in_specs=[pl.BlockSpec((1, L), lambda i: (0, 0))],
            out_specs=pl.BlockSpec((tm, L), lambda i: (i, 0)),
        ),
        compiler_params=pltpu.CompilerParams(
            dimension_semantics=("parallel",),
            vmem_limit_bytes=vmem_limit),
        cost_estimate=pl.CostEstimate(
            flops=0,
            transcendentals=0,
            bytes_accessed=R * L * itemsize + L * itemsize),
    )(row)

    # Folding was contiguous, so flatten, drop padding, reshape to (B, S, D).
    out = out_flat.reshape(-1)
    if out.shape[0] != N * D:
        out = out[: N * D]
    return out.reshape(B, S, D)


if __name__ == "__main__":
    num_embeddings = 4
    embedding_dim = 32
    B, S = 2, 8

    key = jax.random.PRNGKey(0)
    k_table, k_ids = jax.random.split(key)

    # Deterministic parameter init (nn.Embedding default: N(0, 1)), stacked as
    # (num_embeddings, 1, embedding_dim) -- one row per sub-embedding.
    table = jax.random.normal(
        k_table, (num_embeddings, 1, embedding_dim), dtype=jnp.float32)

    # input_ids: element [0, 0] selects which embedding table; the rest are
    # irrelevant to the forward (the lookup index is zeros_like(input_ids)).
    input_ids = jax.random.randint(
        k_ids, (B, S), minval=0, maxval=num_embeddings, dtype=jnp.int32)

    out = segment_embedding(input_ids, table)
    out = jax.block_until_ready(out)

    # Reference (plain JAX) check of the PyTorch semantics.
    seg = input_ids[0, 0]
    ref = jnp.broadcast_to(table[seg, 0][None, None, :], (B, S, embedding_dim))
    assert out.shape == (B, S, embedding_dim)
    assert out.dtype == table.dtype
    assert jnp.allclose(out, ref), "mismatch vs reference"

    print("KERNEL_OK")
</pallas_src>

<mosaic_0001>
module attributes {stable_mosaic.version = 11 : i64} {
  func.func @_segment_embedding_kernel(%arg0: i32, %arg1: memref<1x128xf32, #tpu.memory_space<vmem>>, %arg2: memref<4x128xf32, #tpu.memory_space<vmem>>) attributes {dimension_semantics = [#tpu.dimension_semantics<parallel>], iteration_bounds = array<i64: 1>, scalar_prefetch = 0 : i64, scratch_operands = 0 : i64, tpu.core_type = #tpu.core_type<tc>, window_params = [{pipeline_mode = #tpu.pipeline_mode<synchronous>, transform_indices = @transform_0, window_bounds = array<i64: 1, 128>}, {transform_indices = @transform_1, window_bounds = array<i64: 4, 128>}]} {
    %c0 = arith.constant 0 : index
    %c0_0 = arith.constant 0 : index
    %0 = vector.load %arg1[%c0, %c0_0] : memref<1x128xf32, #tpu.memory_space<vmem>>, vector<1x128xf32>
    %1 = vector.shape_cast %0 : vector<1x128xf32> to vector<1x128xf32>
    %2 = vector.broadcast %1 : vector<1x128xf32> to vector<4x128xf32>
    %c0_1 = arith.constant 0 : index
    %c0_2 = arith.constant 0 : index
    %3 = vector.load %arg2[%c0_1, %c0_2] : memref<4x128xf32, #tpu.memory_space<vmem>>, vector<4x128xf32>
    tpu.vector_store %arg2[%c0_1, %c0_2], %2 {strides = array<i32>} : memref<4x128xf32, #tpu.memory_space<vmem>>, vector<4x128xf32>,
    return
  }
  func.func @transform_0(%arg0: i32) -> (i32, i32) {
    %c0_i32 = arith.constant 0 : i32
    %c0_i32_0 = arith.constant 0 : i32
    %c0_i32_1 = arith.constant 0 : i32
    return %c0_i32, %c0_i32_0 : i32, i32
  }
  func.func @transform_1(%arg0: i32) -> (i32, i32) {
    %c0_i32 = arith.constant 0 : i32
    %c0_i32_0 = arith.constant 0 : i32
    return %arg0, %c0_i32 : i32, i32
  }
}

</mosaic_0001>

<llo_original>
// kernel: tpu_custom_call.1
$region0: #{tpu_custom_call.1}
  #allocation0 [shape = 'u32[]', space=smem, size = 0x4, offset = 0x4, fixed_abs, tag = 'smem constant byte address 0x4 - core index']
  #allocation1 [shape = 'u32[144,128]{1,0:T(1,128)}', space=vmem, size = 0x12000, scoped, tag = 'internal scratch']
  %s0 = inlined_call_operand.hbm [shape: f32[1,128], index: 0, kind: input, shape index: {}]
  %s1 = inlined_call_operand.hbm [shape: f32[4,128], index: 1, kind: output, shape index: {}]
  %s2 = sld [smem:[#allocation0]]
  $region18: #{tpu_custom_call.1} parent=0
    _
  %s4 = ssub.s32 1, %s2
  %s5 = scalar_select 0, %s4, %s2
  $region1: #{tpu_custom_call.1} parent=0
    #allocation2 [shape = 'u8[512]{0}', space=vmem, size = 0x400, scoped, tag = 'input window, operand 0, single buffered']
    #allocation3 [shape = 's32[1]{0}', space=sflag, size = 0x4, scoped, tag = 'scoped memory for tpu_custom_call.1']
    #allocation4 [shape = 's32[1]{0}', space=sflag, size = 0x4, scoped, tag = 'scoped memory for tpu_custom_call.1']
    #allocation5 [shape = 'u8[2048]{0}', space=vmem, size = 0x800, scoped, tag = 'output window, operand 0, single buffered']
    %6 = vsyncpa [#allocation3], 0
    %7 = vsyncpa [#allocation4], 0
    // Predicated region
    $region2: #{tpu_custom_call.1} parent=1 // pred_check
      _
    $region3: #{tpu_custom_call.1} parent=1 // pred_check_branch
      %9 = sbr.rel (0) target = $region5
    $region4: #{tpu_custom_call.1} parent=1 // pred_region
      %s11 = ssub.s32 16, 16
      %12 = vsyncadd [#allocation3], %s11
      %s14 = sshll.u32 [#allocation2], 4
      %s15 = int_to_ptr.vmem [resolvable:$true] %s14
      %17 = dma.hbm_to_vmem [thread:$0]  %s0, 16, %s15, [#allocation3]
    $region5: #{tpu_custom_call.1} parent=1 // pred_fallthru
      _
    // Predicated region
    $region6: #{tpu_custom_call.1} parent=1 // pred_check
      _
    $region7: #{tpu_custom_call.1} parent=1 // pred_check_branch
      %19 = sbr.rel (0) target = $region9
    $region8: #{tpu_custom_call.1} parent=1 // pred_region
      %20 = dma.done [#allocation3], 16
    $region9: #{tpu_custom_call.1} parent=1 // pred_fallthru
      _
    %v21 = vld [vmem:[#allocation2] sm:$0x1]
    %v23 = vlaneseq
    %v24 = vshrl.u32 %v23, 7
    %v25 = vsub.s32 0, %v24
    %v26 = vrot.slane %v21, %v25
    %28 = vst [vmem:[#allocation5] sm:$0xf] %v26
    // Predicated region
    $region10: #{tpu_custom_call.1} parent=1 // pred_check
      _
    $region11: #{tpu_custom_call.1} parent=1 // pred_check_branch
      %30 = sbr.rel (0) target = $region13
    $region12: #{tpu_custom_call.1} parent=1 // pred_region
      %s32 = ssub.s32 64, 64
      %33 = vsyncadd [#allocation4], %s32
      %s35 = sshll.u32 [#allocation5], 4
      %s36 = int_to_ptr.vmem [resolvable:$true] %s35
      %38 = dma.vmem_to_hbm [thread:$0]  %s36, 64, %s1, [#allocation4]
    $region13: #{tpu_custom_call.1} parent=1 // pred_fallthru
      _
    // Predicated region
    $region14: #{tpu_custom_call.1} parent=1 // pred_check
      _
    $region15: #{tpu_custom_call.1} parent=1 // pred_check_branch
      %40 = sbr.rel (0) target = $region17
    $region16: #{tpu_custom_call.1} parent=1 // pred_region
      %41 = dma.done [#allocation4], 64
    $region17: #{tpu_custom_call.1} parent=1 // pred_fallthru
      _
    %42 = vsyncpa [#allocation3], 1
    %43 = vsyncpa [#allocation4], 1

</llo_original>
